<compile_context>
chip_gen: v5e
topology: v5e:2x2
jax: 0.10.0
libtpu: 0.0.40
codegen_flags: <defaults>
</compile_context>

<pallas_src>
import math

import jax
import jax.numpy as jnp
from jax.experimental import pallas as pl
from jax.experimental.pallas import tpu as pltpu

_LANE = 128                      # lane width (last dim granularity)
_SUBLANE = 8                     # sublane granularity (second-to-last dim)
_TF_CAP = 8192                   # max lanes per block
_TARGET_BLOCK_BYTES = 4 * 1024 * 1024   # ~4 MiB x block (review: 2-8 MiB)
_VMEM_LIMIT = 32 * 1024 * 1024   # covers 4 x 4 MiB double-buffered x/out + params


def _linear_masked_sigmoid_kernel(x_ref, mask_ref, slope_ref, bias_ref, o_ref):
    # x/o blocks: (TB, TF); mask/slope/bias blocks: (1, TF) -> broadcast over
    # the sublane (batch) axis inside the VPU ops.
    x = x_ref[...].astype(jnp.float32)
    mask = mask_ref[...].astype(jnp.float32)
    slope = slope_ref[...].astype(jnp.float32)
    bias = bias_ref[...].astype(jnp.float32)

    s = jax.nn.sigmoid(x)                    # EUP transcendental path
    lin = x * slope + bias
    out = s * (1.0 - mask) + lin * mask      # exact form from the PyTorch op
    o_ref[...] = out.astype(o_ref.dtype)


def _round_up(x, m):
    return ((x + m - 1) // m) * m


def _largest_divisor_tile(dim, unit, cap):
    """Largest multiple of `unit` that divides `dim` and is <= cap.

    `dim` must itself be a multiple of `unit` (guaranteed by wrapper padding),
    so this always returns a valid tile (never the full-dimension fallback).
    """
    cap = max(unit, min(cap, dim))
    t = cap - (cap % unit)
    while t >= unit:
        if dim % t == 0:
            return t
        t -= unit
    return unit


def linear_masked_sigmoid(x, mask, slope, bias):
    """x: (B, *size); mask/slope/bias: shape `size` (broadcast over batch)."""
    B = x.shape[0]
    size = x.shape[1:]
    assert mask.shape == tuple(size)
    assert slope.shape == tuple(size)
    assert bias.shape == tuple(size)

    dtype = x.dtype
    # Cast params (e.g. bool masks) to the compute I/O dtype up front.
    mask = mask.astype(dtype)
    slope = slope.astype(dtype)
    bias = bias.astype(dtype)

    N = int(math.prod(size)) if size else 1
    itemsize = jnp.dtype(dtype).itemsize

    x2 = x.reshape(B, N)
    m2 = mask.reshape(1, N)
    s2 = slope.reshape(1, N)
    b2 = bias.reshape(1, N)

    # --- tile selection -----------------------------------------------------
    # Lane axis: pad N to a multiple of 128, pick the largest 128-multiple
    # divisor <= _TF_CAP.
    Npad = _round_up(N, _LANE)
    TF = _largest_divisor_tile(Npad, _LANE, _TF_CAP)

    # Sublane (batch) axis: aim for ~_TARGET_BLOCK_BYTES per x block.
    rows_target = max(_SUBLANE, _TARGET_BLOCK_BYTES // (TF * itemsize))
    if B <= rows_target:
        TB, Bpad = B, B                      # whole batch in one block
    else:
        Bpad = _round_up(B, _SUBLANE)
        TB = _largest_divisor_tile(Bpad, _SUBLANE, rows_target)

    # --- padding (zeros; padded region is sliced off afterwards) ------------
    if Npad != N:
        pad_n = Npad - N
        x2 = jnp.pad(x2, ((0, 0), (0, pad_n)))
        m2 = jnp.pad(m2, ((0, 0), (0, pad_n)))
        s2 = jnp.pad(s2, ((0, 0), (0, pad_n)))
        b2 = jnp.pad(b2, ((0, 0), (0, pad_n)))
    if Bpad != B:
        x2 = jnp.pad(x2, ((0, Bpad - B), (0, 0)))

    # Grid: feature tiles outer (megacore-shardable), batch tiles inner so the
    # (1, TF) param blocks keep the same block index across the inner axis and
    # are only DMA'd once per feature tile.
    grid = (Npad // TF, Bpad // TB)

    out2 = pl.pallas_call(
        _linear_masked_sigmoid_kernel,
        out_shape=jax.ShapeDtypeStruct((Bpad, Npad), dtype),
        grid_spec=pltpu.PrefetchScalarGridSpec(
            num_scalar_prefetch=0,
            grid=grid,
            in_specs=[
                pl.BlockSpec((TB, TF), lambda f, b: (b, f)),   # x
                pl.BlockSpec((1, TF), lambda f, b: (0, f)),    # mask
                pl.BlockSpec((1, TF), lambda f, b: (0, f)),    # slope
                pl.BlockSpec((1, TF), lambda f, b: (0, f)),    # bias
            ],
            out_specs=pl.BlockSpec((TB, TF), lambda f, b: (b, f)),
        ),
        compiler_params=pltpu.CompilerParams(
            dimension_semantics=("parallel", "parallel"),
            vmem_limit_bytes=_VMEM_LIMIT,
        ),
        cost_estimate=pl.CostEstimate(
            flops=6 * Bpad * Npad,
            transcendentals=Bpad * Npad,
            bytes_accessed=(2 * Bpad * Npad + 3 * Npad) * itemsize,
        ),
    )(x2, m2, s2, b2)

    return out2[:B, :N].reshape(x.shape)


def reference(x, mask, slope, bias):
    s = jax.nn.sigmoid(x)
    return s * (1.0 - mask) + (x * slope + bias) * mask


# TODO(synk): only the forward pass is implemented; the custom autograd
# backward of LinearMaskedSigmoidOp is not translated.

if __name__ == "__main__":
    key = jax.random.PRNGKey(0)
    kx, km, ks, kb = jax.random.split(key, 4)

    B, C, H, W = 2, 4, 16, 16
    size = (C, H, W)

    x = jax.random.normal(kx, (B, C, H, W), dtype=jnp.float32)

    # Buffers mirroring the PyTorch __init__ (threshold at 0.5 so both the
    # sigmoid and linear branches are actually exercised by the test).
    mask = (jax.random.uniform(km, size) > 0.5).astype(jnp.float32)
    slope = jax.random.uniform(ks, size, dtype=jnp.float32)
    bias = jax.random.uniform(kb, size, dtype=jnp.float32)

    out = linear_masked_sigmoid(x, mask, slope, bias)
    out = jax.block_until_ready(out)

    ref = reference(x, mask, slope, bias)
    assert out.shape == (B, C, H, W)
    assert jnp.allclose(out, ref, atol=1e-5, rtol=1e-5)

    print("KERNEL_OK")
</pallas_src>

<mosaic_0001>
module attributes {stable_mosaic.version = 11 : i64} {
  func.func @_linear_masked_sigmoid_kernel(%arg0: i32, %arg1: i32, %arg2: memref<2x1024xf32, #tpu.memory_space<vmem>>, %arg3: memref<1x1024xf32, #tpu.memory_space<vmem>>, %arg4: memref<1x1024xf32, #tpu.memory_space<vmem>>, %arg5: memref<1x1024xf32, #tpu.memory_space<vmem>>, %arg6: memref<2x1024xf32, #tpu.memory_space<vmem>>) attributes {dimension_semantics = [#tpu.dimension_semantics<parallel>, #tpu.dimension_semantics<parallel>], iteration_bounds = array<i64: 1, 1>, scalar_prefetch = 0 : i64, scratch_operands = 0 : i64, tpu.core_type = #tpu.core_type<tc>, window_params = [{transform_indices = @transform_0, window_bounds = array<i64: 2, 1024>}, {transform_indices = @transform_1, window_bounds = array<i64: 1, 1024>}, {transform_indices = @transform_2, window_bounds = array<i64: 1, 1024>}, {transform_indices = @transform_3, window_bounds = array<i64: 1, 1024>}, {transform_indices = @transform_4, window_bounds = array<i64: 2, 1024>}]} {
    %c0 = arith.constant 0 : index
    %c0_0 = arith.constant 0 : index
    %0 = vector.load %arg2[%c0, %c0_0] : memref<2x1024xf32, #tpu.memory_space<vmem>>, vector<2x1024xf32>
    %c0_1 = arith.constant 0 : index
    %c0_2 = arith.constant 0 : index
    %1 = vector.load %arg3[%c0_1, %c0_2] : memref<1x1024xf32, #tpu.memory_space<vmem>>, vector<1x1024xf32>
    %c0_3 = arith.constant 0 : index
    %c0_4 = arith.constant 0 : index
    %2 = vector.load %arg4[%c0_3, %c0_4] : memref<1x1024xf32, #tpu.memory_space<vmem>>, vector<1x1024xf32>
    %c0_5 = arith.constant 0 : index
    %c0_6 = arith.constant 0 : index
    %3 = vector.load %arg5[%c0_5, %c0_6] : memref<1x1024xf32, #tpu.memory_space<vmem>>, vector<1x1024xf32>
    %4 = arith.negf %0 : vector<2x1024xf32>
    %5 = math.exp %4 : vector<2x1024xf32>
    %cst = arith.constant 1.000000e+00 : f32
    %6 = vector.broadcast %cst : f32 to vector<2x1024xf32>
    %7 = arith.addf %6, %5 : vector<2x1024xf32>
    %8 = arith.divf %6, %7 : vector<2x1024xf32>
    %9 = vector.broadcast %2 : vector<1x1024xf32> to vector<2x1024xf32>
    %10 = arith.mulf %0, %9 : vector<2x1024xf32>
    %11 = vector.broadcast %3 : vector<1x1024xf32> to vector<2x1024xf32>
    %12 = arith.addf %10, %11 : vector<2x1024xf32>
    %cst_7 = arith.constant 1.000000e+00 : f32
    %13 = vector.broadcast %cst_7 : f32 to vector<1x1024xf32>
    %14 = arith.subf %13, %1 : vector<1x1024xf32>
    %15 = vector.broadcast %14 : vector<1x1024xf32> to vector<2x1024xf32>
    %16 = arith.mulf %8, %15 : vector<2x1024xf32>
    %17 = vector.broadcast %1 : vector<1x1024xf32> to vector<2x1024xf32>
    %18 = arith.mulf %12, %17 : vector<2x1024xf32>
    %19 = arith.addf %16, %18 : vector<2x1024xf32>
    %c0_8 = arith.constant 0 : index
    %c0_9 = arith.constant 0 : index
    %20 = vector.load %arg6[%c0_8, %c0_9] : memref<2x1024xf32, #tpu.memory_space<vmem>>, vector<2x1024xf32>
    tpu.vector_store %arg6[%c0_8, %c0_9], %19 {strides = array<i32>} : memref<2x1024xf32, #tpu.memory_space<vmem>>, vector<2x1024xf32>,
    return
  }
  func.func @transform_0(%arg0: i32, %arg1: i32) -> (i32, i32) {
    %c0_i32 = arith.constant 0 : i32
    return %arg1, %arg0 : i32, i32
  }
  func.func @transform_1(%arg0: i32, %arg1: i32) -> (i32, i32) {
    %c0_i32 = arith.constant 0 : i32
    %c0_i32_0 = arith.constant 0 : i32
    return %c0_i32, %arg0 : i32, i32
  }
  func.func @transform_2(%arg0: i32, %arg1: i32) -> (i32, i32) {
    %c0_i32 = arith.constant 0 : i32
    %c0_i32_0 = arith.constant 0 : i32
    return %c0_i32, %arg0 : i32, i32
  }
  func.func @transform_3(%arg0: i32, %arg1: i32) -> (i32, i32) {
    %c0_i32 = arith.constant 0 : i32
    %c0_i32_0 = arith.constant 0 : i32
    return %c0_i32, %arg0 : i32, i32
  }
  func.func @transform_4(%arg0: i32, %arg1: i32) -> (i32, i32) {
    %c0_i32 = arith.constant 0 : i32
    return %arg1, %arg0 : i32, i32
  }
}

</mosaic_0001>

<llo_original>
// kernel: tpu_custom_call.1
$region0: #{tpu_custom_call.1}
  #allocation0 [shape = 'u32[]', space=smem, size = 0x4, offset = 0x4, fixed_abs, tag = 'smem constant byte address 0x4 - core index']
  #allocation1 [shape = 'u32[72,128]{1,0:T(1,128)}', space=vmem, size = 0x9000, scoped, tag = 'internal scratch']
  %s0 = inlined_call_operand.hbm [shape: f32[2,1024], index: 0, kind: input, shape index: {}]
  %s1 = inlined_call_operand.hbm [shape: f32[1,1024], index: 1, kind: input, shape index: {}]
  %s2 = inlined_call_operand.hbm [shape: f32[1,1024], index: 2, kind: input, shape index: {}]
  %s3 = inlined_call_operand.hbm [shape: f32[1,1024], index: 3, kind: input, shape index: {}]
  %s4 = inlined_call_operand.hbm [shape: f32[2,1024], index: 4, kind: output, shape index: {}]
  %s5 = sld [smem:[#allocation0]]
  $region42: #{tpu_custom_call.1} parent=0
    _
  %s7 = ssub.s32 1, %s5
  %s8 = scalar_select 0, %s7, %s5
  $region1: #{tpu_custom_call.1} parent=0
    #allocation2 [shape = 'u8[8192]{0}', space=vmem, size = 0x2000, scoped, tag = 'input window, operand 0, single buffered']
    #allocation3 [shape = 's32[1]{0}', space=sflag, size = 0x4, scoped, tag = 'scoped memory for tpu_custom_call.1']
    #allocation4 [shape = 's32[1]{0}', space=sflag, size = 0x4, scoped, tag = 'scoped memory for tpu_custom_call.1']
    #allocation5 [shape = 'u8[4096]{0}', space=vmem, size = 0x1000, scoped, tag = 'input window, operand 1, single buffered']
    #allocation6 [shape = 's32[1]{0}', space=sflag, size = 0x4, scoped, tag = 'scoped memory for tpu_custom_call.1']
    #allocation7 [shape = 'u8[4096]{0}', space=vmem, size = 0x1000, scoped, tag = 'input window, operand 2, single buffered']
    #allocation8 [shape = 'u8[4096]{0}', space=vmem, size = 0x1000, scoped, tag = 'input window, operand 3, single buffered']
    #allocation9 [shape = 's32[1]{0}', space=sflag, size = 0x4, scoped, tag = 'scoped memory for tpu_custom_call.1']
    #allocation10 [shape = 'u8[8192]{0}', space=vmem, size = 0x2000, scoped, tag = 'output window, operand 0, single buffered']
    %9 = vsyncpa [#allocation3], 0
    %10 = vsyncpa [#allocation6], 0
    %11 = vsyncpa [#allocation9], 0
    %12 = vsyncpa [#allocation4], 0
    // Predicated region
    $region2: #{tpu_custom_call.1} parent=1 // pred_check
      _
    $region3: #{tpu_custom_call.1} parent=1 // pred_check_branch
      %14 = sbr.rel (0) target = $region5
    $region4: #{tpu_custom_call.1} parent=1 // pred_region
      %16 = vsyncadd [#allocation3], 0
      %s18 = sshll.u32 %s0, 4
      %s19 = int_to_ptr.hbm [resolvable:$true] %s18
      %s20 = sshll.u32 [#allocation2], 4
      %s21 = int_to_ptr.vmem [resolvable:$true] %s20
      %23 = dma.hbm_to_vmem [thread:$0]  %s19, 256, %s21, [#allocation3]
    $region5: #{tpu_custom_call.1} parent=1 // pred_fallthru
      _
    // Predicated region
    $region6: #{tpu_custom_call.1} parent=1 // pred_check
      _
    $region7: #{tpu_custom_call.1} parent=1 // pred_check_branch
      %25 = sbr.rel (0) target = $region9
    $region8: #{tpu_custom_call.1} parent=1 // pred_region
      %27 = vsyncadd [#allocation6], 0
      %s29 = sshll.u32 %s1, 4
      %s30 = int_to_ptr.hbm [resolvable:$true] %s29
      %s31 = sshll.u32 [#allocation5], 4
      %s32 = int_to_ptr.vmem [resolvable:$true] %s31
      %34 = dma.hbm_to_vmem [thread:$0]  %s30, 128, %s32, [#allocation6]
    $region9: #{tpu_custom_call.1} parent=1 // pred_fallthru
      _
    // Predicated region
    $region10: #{tpu_custom_call.1} parent=1 // pred_check
      _
    $region11: #{tpu_custom_call.1} parent=1 // pred_check_branch
      %36 = sbr.rel (0) target = $region13
    $region12: #{tpu_custom_call.1} parent=1 // pred_region
      %38 = vsyncadd [#allocation6], 0
      %s40 = sshll.u32 %s2, 4
      %s41 = int_to_ptr.hbm [resolvable:$true] %s40
      %s42 = sshll.u32 [#allocation7], 4
      %s43 = int_to_ptr.vmem [resolvable:$true] %s42
      %45 = dma.hbm_to_vmem [thread:$0]  %s41, 128, %s43, [#allocation6]
    $region13: #{tpu_custom_call.1} parent=1 // pred_fallthru
      _
    // Predicated region
    $region14: #{tpu_custom_call.1} parent=1 // pred_check
      _
    $region15: #{tpu_custom_call.1} parent=1 // pred_check_branch
      %47 = sbr.rel (0) target = $region17
    $region16: #{tpu_custom_call.1} parent=1 // pred_region
      %49 = vsyncadd [#allocation9], 0
      %s51 = sshll.u32 %s3, 4
      %s52 = int_to_ptr.hbm [resolvable:$true] %s51
      %s53 = sshll.u32 [#allocation8], 4
      %s54 = int_to_ptr.vmem [resolvable:$true] %s53
      %56 = dma.hbm_to_vmem [thread:$0]  %s52, 128, %s54, [#allocation9]
    $region17: #{tpu_custom_call.1} parent=1 // pred_fallthru
      _
    // Predicated region
    $region18: #{tpu_custom_call.1} parent=1 // pred_check
      _
    $region19: #{tpu_custom_call.1} parent=1 // pred_check_branch
      %58 = sbr.rel (0) target = $region21
    $region20: #{tpu_custom_call.1} parent=1 // pred_region
      %60 = dma.done [#allocation3], 256
    $region21: #{tpu_custom_call.1} parent=1 // pred_fallthru
      _
    // Predicated region
    $region22: #{tpu_custom_call.1} parent=1 // pred_check
      _
    $region23: #{tpu_custom_call.1} parent=1 // pred_check_branch
      %62 = sbr.rel (0) target = $region25
    $region24: #{tpu_custom_call.1} parent=1 // pred_region
      %64 = dma.done [#allocation6], 128
    $region25: #{tpu_custom_call.1} parent=1 // pred_fallthru
      _
    // Predicated region
    $region26: #{tpu_custom_call.1} parent=1 // pred_check
      _
    $region27: #{tpu_custom_call.1} parent=1 // pred_check_branch
      %66 = sbr.rel (0) target = $region29
    $region28: #{tpu_custom_call.1} parent=1 // pred_region
      %68 = dma.done [#allocation6], 128
    $region29: #{tpu_custom_call.1} parent=1 // pred_fallthru
      _
    // Predicated region
    $region30: #{tpu_custom_call.1} parent=1 // pred_check
      _
    $region31: #{tpu_custom_call.1} parent=1 // pred_check_branch
      %70 = sbr.rel (0) target = $region33
    $region32: #{tpu_custom_call.1} parent=1 // pred_region
      %72 = dma.done [#allocation9], 128
    $region33: #{tpu_custom_call.1} parent=1 // pred_fallthru
      _
    %v73 = vld [vmem:[#allocation2] sm:$0xff]
    %v74 = vld [vmem:[#allocation2 + $0x8] sm:$0xff]
    %v75 = vld [vmem:[#allocation5] sm:$0xff]
    %v76 = vld [vmem:[#allocation7] sm:$0xff]
    %v77 = vld [vmem:[#allocation8] sm:$0xff]
    %v78 = vxor.u32 %v73, 2147483648
    %v79 = vxor.u32 %v74, 2147483648
    %v80 = vmul.f32 %v78, 1.442695
    %v81 = vpow.pop %v80
    %v82 = vmul.f32 %v79, 1.442695
    %v83 = vpow.pop %v82
    %v84 = vadd.f32 %v81, 1.0
    %v85 = vadd.f32 %v83, 1.0
    %v86 = vrcp.pop %v84
    %v87 = vmul.f32 %v84, %v86
    %v88 = vsub.f32 1.0, %v87
    %v89 = vmul.f32 %v86, %v88
    %v90 = vadd.f32 %v86, %v89
    %vm91 = vweird.f32 %v84
    %vm92 = vweird.f32 %v86
    %vm93 = vmor %vm91, %vm92
    %v94 = vsel %vm93, %v86, %v90
    %v95 = vand.u32 2147483647, %v84
    %vm96 = vcmp.eq.f32.partialorder %v95, 8.507059e+37
    %v97 = vand.u32 %v84, 2147483648
    %v98 = vor.u32 1.1754944e-38, %v97
    %v99 = vsel %vm96, %v98, %v94
    %v100 = vmul.f32 1.0, %v99
    %v101 = vrcp.pop %v85
    %v102 = vmul.f32 %v85, %v101
    %v103 = vsub.f32 1.0, %v102
    %v104 = vmul.f32 %v101, %v103
    %v105 = vadd.f32 %v101, %v104
    %vm106 = vweird.f32 %v85
    %vm107 = vweird.f32 %v101
    %vm108 = vmor %vm106, %vm107
    %v109 = vsel %vm108, %v101, %v105
    %v110 = vand.u32 2147483647, %v85
    %vm111 = vcmp.eq.f32.partialorder %v110, 8.507059e+37
    %v112 = vand.u32 %v85, 2147483648
    %v113 = vor.u32 1.1754944e-38, %v112
    %v114 = vsel %vm111, %v113, %v109
    %v115 = vmul.f32 1.0, %v114
    %v117 = vperm.slane %v76, 0
    %v118 = vperm.slane %v76, 1
    %v119 = vperm.slane %v76, 2
    %v120 = vperm.slane %v76, 3
    %v121 = vperm.slane %v76, 4
    %v122 = vperm.slane %v76, 5
    %v123 = vperm.slane %v76, 6
    %v124 = vperm.slane %v76, 7
    %v125 = vrot.slane %v118, 6
    %v126 = vrot.slane %v119, 4
    %v127 = vrot.slane %v120, 2
    %v128 = vrot.slane %v122, 6
    %v129 = vrot.slane %v123, 4
    %v130 = vrot.slane %v124, 2
    %vm131 = vcmask 1041408
    %v132 = vsel %vm131, %v117, %v125
    %vm133 = vcmask 1045508
    %v134 = vsel %vm133, %v126, %v127
    %vm135 = vcmask 1043456
    %v136 = vsel %vm135, %v132, %v134
    %v137 = vsel %vm131, %v121, %v128
    %v138 = vsel %vm133, %v129, %v130
    %v139 = vsel %vm135, %v137, %v138
    %v142 = vmul.f32 %v73, %v136
    %v143 = vmul.f32 %v74, %v139
    %v145 = vperm.slane %v77, 0
    %v146 = vperm.slane %v77, 1
    %v147 = vperm.slane %v77, 2
    %v148 = vperm.slane %v77, 3
    %v149 = vperm.slane %v77, 4
    %v150 = vperm.slane %v77, 5
    %v151 = vperm.slane %v77, 6
    %v152 = vperm.slane %v77, 7
    %v153 = vrot.slane %v146, 6
    %v154 = vrot.slane %v147, 4
    %v155 = vrot.slane %v148, 2
    %v156 = vrot.slane %v150, 6
    %v157 = vrot.slane %v151, 4
    %v158 = vrot.slane %v152, 2
    %v159 = vsel %vm131, %v145, %v153
    %v160 = vsel %vm133, %v154, %v155
    %v161 = vsel %vm135, %v159, %v160
    %v162 = vsel %vm131, %v149, %v156
    %v163 = vsel %vm133, %v157, %v158
    %v164 = vsel %vm135, %v162, %v163
    %v167 = vadd.f32 %v142, %v161
    %v168 = vadd.f32 %v143, %v164
    %v169 = vsub.f32 1.0, %v75
    %v171 = vperm.slane %v169, 0
    %v172 = vperm.slane %v169, 1
    %v173 = vperm.slane %v169, 2
    %v174 = vperm.slane %v169, 3
    %v175 = vperm.slane %v169, 4
    %v176 = vperm.slane %v169, 5
    %v177 = vperm.slane %v169, 6
    %v178 = vperm.slane %v169, 7
    %v179 = vrot.slane %v172, 6
    %v180 = vrot.slane %v173, 4
    %v181 = vrot.slane %v174, 2
    %v182 = vrot.slane %v176, 6
    %v183 = vrot.slane %v177, 4
    %v184 = vrot.slane %v178, 2
    %v185 = vsel %vm131, %v171, %v179
    %v186 = vsel %vm133, %v180, %v181
    %v187 = vsel %vm135, %v185, %v186
    %v188 = vsel %vm131, %v175, %v182
    %v189 = vsel %vm133, %v183, %v184
    %v190 = vsel %vm135, %v188, %v189
    %v193 = vmul.f32 %v100, %v187
    %v194 = vmul.f32 %v115, %v190
    %v196 = vperm.slane %v75, 0
    %v197 = vperm.slane %v75, 1
    %v198 = vperm.slane %v75, 2
    %v199 = vperm.slane %v75, 3
    %v200 = vperm.slane %v75, 4
    %v201 = vperm.slane %v75, 5
    %v202 = vperm.slane %v75, 6
    %v203 = vperm.slane %v75, 7
    %v204 = vrot.slane %v197, 6
    %v205 = vrot.slane %v198, 4
    %v206 = vrot.slane %v199, 2
    %v207 = vrot.slane %v201, 6
    %v208 = vrot.slane %v202, 4
    %v209 = vrot.slane %v203, 2
    %v210 = vsel %vm131, %v196, %v204
    %v211 = vsel %vm133, %v205, %v206
    %v212 = vsel %vm135, %v210, %v211
    %v213 = vsel %vm131, %v200, %v207
    %v214 = vsel %vm133, %v208, %v209
    %v215 = vsel %vm135, %v213, %v214
    %v218 = vmul.f32 %v167, %v212
    %v219 = vmul.f32 %v168, %v215
    %v220 = vadd.f32 %v193, %v218
    %v221 = vadd.f32 %v194, %v219
    %222 = vst [vmem:[#allocation10] sm:$0xff] %v220
    %223 = vst [vmem:[#allocation10 + $0x8] sm:$0xff] %v221
    // Predicated region
    $region34: #{tpu_custom_call.1} parent=1 // pred_check
      _
    $region35: #{tpu_custom_call.1} parent=1 // pred_check_branch
      %225 = sbr.rel (0) target = $region37
    $region36: #{tpu_custom_call.1} parent=1 // pred_region
      %227 = vsyncadd [#allocation4], 0
      %s229 = sshll.u32 [#allocation10], 4
      %s230 = int_to_ptr.vmem [resolvable:$true] %s229
      %s231 = sshll.u32 %s4, 4
      %s232 = int_to_ptr.hbm [resolvable:$true] %s231
      %234 = dma.vmem_to_hbm [thread:$0]  %s230, 256, %s232, [#allocation4]
    $region37: #{tpu_custom_call.1} parent=1 // pred_fallthru
      _
    // Predicated region
    $region38: #{tpu_custom_call.1} parent=1 // pred_check
      _
    $region39: #{tpu_custom_call.1} parent=1 // pred_check_branch
      %236 = sbr.rel (0) target = $region41
    $region40: #{tpu_custom_call.1} parent=1 // pred_region
      %238 = dma.done [#allocation4], 256
    $region41: #{tpu_custom_call.1} parent=1 // pred_fallthru
      _
    %239 = vsyncpa [#allocation3], 1
    %240 = vsyncpa [#allocation6], 1
    %241 = vsyncpa [#allocation9], 1
    %242 = vsyncpa [#allocation4], 1

</llo_original>
